<compile_context>
chip_gen: v7x
topology: tpu7x:2x2x1
jax: 0.10.0
libtpu: 0.0.40
codegen_flags: <defaults>
</compile_context>

<pallas_src>
import functools

import jax
import jax.numpy as jnp
from jax.experimental import pallas as pl
from jax.experimental.pallas import tpu as pltpu

_MIB = 1024 * 1024


# --------------------------- hardware-aware config -------------------------- #
def _vmem_capacity_bytes():
    try:
        info = pltpu.get_tpu_info()
        cap = getattr(info, "vmem_capacity_bytes", None)
        if cap:
            return int(cap)
    except Exception:
        pass
    return 64 * _MIB  # conservative default (v7x-class)


_HW_CFG = None


def _hw_config():
    """Generation-aware VMEM budgets (v7x: 64 MiB physical; v5e/v6e: 128 MiB)."""
    global _HW_CFG
    if _HW_CFG is None:
        cap = _vmem_capacity_bytes()
        if cap <= 64 * _MIB:  # v7x-class
            _HW_CFG = dict(vmem_limit=48 * _MIB, tile_target=6 * _MIB,
                           fused_budget=40 * _MIB)
        else:                 # v5e / v6e-class
            _HW_CFG = dict(vmem_limit=96 * _MIB, tile_target=8 * _MIB,
                           fused_budget=80 * _MIB)
    return _HW_CFG


# ------------------------------ tile helpers ------------------------------- #
def _round_down(x, m):
    return (x // m) * m


def _choose_c_tile(C):
    if C < 8:
        return C
    c_tile = min(_round_down(C, 8), 64)
    if C >= 64:
        # Keep >= 2 channel blocks so the "parallel" channel axis can shard
        # across both TensorCores on v7x without collapsing the tile size.
        c_tile = min(c_tile, max(8, _round_down(C // 2, 8)))
    return c_tile


def _choose_l_tile(L, c_tile, itemsize, target_bytes):
    if L <= 128:
        return L
    max_l = max(128, target_bytes // max(1, c_tile * itemsize))
    max_l = min(max_l, 16384)           # bounds the static fold loop (<=128 folds)
    if L <= max_l and L % 128 == 0:
        return L                         # one contiguous block per (n, c-tile): no mask
    return max(128, _round_down(min(L, max_l), 128))


# ---------------------- fused single-pass kernel (small) -------------------- #
def _bn_fused_kernel(x_ref, gamma_ref, beta_ref, o_ref, *, inv_count, eps, fold_w):
    # x_ref/o_ref: (N, c_tile, L) slab resident in VMEM; gamma/beta: (c_tile, 1)
    n_batch, c_tile, L = x_ref.shape
    n_folds = L // fold_w  # exact by construction

    def stats_body(n, carry):
        s_p, ss_p = carry
        for j in range(n_folds):                       # static unroll over lane chunks
            blk = x_ref[n, :, j * fold_w:(j + 1) * fold_w].astype(jnp.float32)
            s_p = s_p + blk
            ss_p = ss_p + blk * blk
        return s_p, ss_p

    zeros = jnp.zeros((c_tile, fold_w), jnp.float32)
    s_p, ss_p = jax.lax.fori_loop(0, n_batch, stats_body, (zeros, zeros))

    mean = jnp.sum(s_p, axis=1, keepdims=True) * inv_count        # (c_tile, 1)
    ex2 = jnp.sum(ss_p, axis=1, keepdims=True) * inv_count
    var = jnp.maximum(ex2 - mean * mean, 0.0)                     # guard cancellation
    inv_std = jax.lax.rsqrt(var + eps)
    scale = gamma_ref[...] * inv_std
    shift = beta_ref[...] - mean * scale
    scale_b = jnp.broadcast_to(scale, (c_tile, fold_w))           # hoisted broadcasts
    shift_b = jnp.broadcast_to(shift, (c_tile, fold_w))

    @pl.loop(0, n_batch)
    def _norm(n):
        for j in range(n_folds):
            blk = x_ref[n, :, j * fold_w:(j + 1) * fold_w].astype(jnp.float32)
            o_ref[n, :, j * fold_w:(j + 1) * fold_w] = (
                blk * scale_b + shift_b).astype(o_ref.dtype)


# --------------------------- pass 1: statistics ----------------------------- #
def _bn_stats_kernel(x_ref, sum_ref, sumsq_ref, acc_s, acc_ss, *,
                     l_total, l_tile, acc_w, n_folds, masked):
    # x_ref: (1, c_tile, l_tile) tile; sum_ref/sumsq_ref: (c_tile, 1) outputs.
    # acc_s/acc_ss: small (c_tile, acc_w) f32 accumulators persisting over (N, L).
    n_i = pl.program_id(1)
    l_i = pl.program_id(2)

    @pl.when(jnp.logical_and(n_i == 0, l_i == 0))
    def _init():
        acc_s[...] = jnp.zeros_like(acc_s)
        acc_ss[...] = jnp.zeros_like(acc_ss)

    c_tile = acc_s.shape[0]
    if masked:
        # Valid lanes remaining in this tile (>= l_tile for interior tiles, so
        # the compare is an all-true no-op there).  One shared iota constant.
        limit = l_total - l_i * l_tile
        lane = jax.lax.broadcasted_iota(jnp.int32, (c_tile, acc_w), 1)

    s_p = jnp.zeros((c_tile, acc_w), jnp.float32)
    ss_p = jnp.zeros((c_tile, acc_w), jnp.float32)
    for j in range(n_folds):                            # static unroll, VPU adds only
        blk = x_ref[0, :, j * acc_w:(j + 1) * acc_w].astype(jnp.float32)
        if masked:
            blk = jnp.where(lane < (limit - j * acc_w), blk, 0.0)
        s_p = s_p + blk
        ss_p = ss_p + blk * blk
    acc_s[...] = acc_s[...] + s_p
    acc_ss[...] = acc_ss[...] + ss_p

    @pl.when(jnp.logical_and(n_i == pl.num_programs(1) - 1,
                             l_i == pl.num_programs(2) - 1))
    def _finalize():
        # One cross-lane (XLU) reduce per channel tile.
        sum_ref[...] = jnp.sum(acc_s[...], axis=1, keepdims=True)
        sumsq_ref[...] = jnp.sum(acc_ss[...], axis=1, keepdims=True)


# ---------------------------- pass 2: normalize ------------------------------ #
def _bn_norm_kernel(x_ref, sum_ref, sumsq_ref, gamma_ref, beta_ref, o_ref, *,
                    inv_count, eps):
    # Per-channel scale/shift computed in-kernel (c_tile rsqrt's: negligible).
    mean = sum_ref[...] * inv_count                       # (c_tile, 1)
    ex2 = sumsq_ref[...] * inv_count
    var = jnp.maximum(ex2 - mean * mean, 0.0)
    inv_std = jax.lax.rsqrt(var + eps)
    scale = gamma_ref[...] * inv_std
    shift = beta_ref[...] - mean * scale
    x = x_ref[...].astype(jnp.float32)                    # (1, c_tile, l_tile)
    o_ref[...] = (x * scale + shift).astype(o_ref.dtype)  # one FMA per element


# ------------------------------ BN2d wrapper --------------------------------- #
@functools.partial(jax.jit, static_argnames=("eps",))
def _batch_norm_2d_pallas(x_nchw, gamma, beta, eps=1e-5):
    """Training-mode BatchNorm2d forward (per-channel stats over N, H, W)."""
    N, C, H, W = x_nchw.shape
    L = H * W
    x = x_nchw.reshape(N, C, L)                           # zero-copy reshape
    itemsize = x.dtype.itemsize
    cfg = _hw_config()
    inv_count = 1.0 / float(N * L)

    c_tile = _choose_c_tile(C)
    c_blocks = pl.cdiv(C, c_tile)
    gamma2 = gamma.astype(jnp.float32).reshape(C, 1)
    beta2 = beta.astype(jnp.float32).reshape(C, 1)

    # ---- fused single-pass fast path: 1 HBM read + 1 write instead of 2 + 1 ----
    fold_w = L if L < 128 else 128
    slab_bytes = N * c_tile * L * itemsize
    fused_ok = ((L < 128 or L % 128 == 0)
                and (L // fold_w) <= 64
                and 4 * slab_bytes <= cfg["fused_budget"])
    if fused_ok:
        kernel = functools.partial(_bn_fused_kernel, inv_count=inv_count,
                                   eps=eps, fold_w=fold_w)
        y = pl.pallas_call(
            kernel,
            out_shape=jax.ShapeDtypeStruct((N, C, L), x.dtype),
            grid=(c_blocks,),
            in_specs=[
                pl.BlockSpec((N, c_tile, L), lambda ci: (0, ci, 0)),
                pl.BlockSpec((c_tile, 1), lambda ci: (ci, 0)),
                pl.BlockSpec((c_tile, 1), lambda ci: (ci, 0)),
            ],
            out_specs=pl.BlockSpec((N, c_tile, L), lambda ci: (0, ci, 0)),
            compiler_params=pltpu.CompilerParams(
                dimension_semantics=("parallel",),
                vmem_limit_bytes=cfg["vmem_limit"]),
        )(x, gamma2, beta2)
        return y.reshape(N, C, H, W)

    # ---------------------------- two-pass path ------------------------------ #
    l_tile = _choose_l_tile(L, c_tile, itemsize, cfg["tile_target"])
    l_blocks = pl.cdiv(L, l_tile)
    acc_w = l_tile if l_tile < 128 else 128
    n_folds = l_tile // acc_w
    masked = (L % l_tile) != 0

    stats_kernel = functools.partial(
        _bn_stats_kernel, l_total=L, l_tile=l_tile, acc_w=acc_w,
        n_folds=n_folds, masked=masked)
    ch_sum, ch_sumsq = pl.pallas_call(
        stats_kernel,
        out_shape=(jax.ShapeDtypeStruct((C, 1), jnp.float32),
                   jax.ShapeDtypeStruct((C, 1), jnp.float32)),
        grid=(c_blocks, N, l_blocks),
        in_specs=[pl.BlockSpec((1, c_tile, l_tile), lambda ci, n, li: (n, ci, li))],
        out_specs=(pl.BlockSpec((c_tile, 1), lambda ci, n, li: (ci, 0)),
                   pl.BlockSpec((c_tile, 1), lambda ci, n, li: (ci, 0))),
        scratch_shapes=[pltpu.VMEM((c_tile, acc_w), jnp.float32),
                        pltpu.VMEM((c_tile, acc_w), jnp.float32)],
        compiler_params=pltpu.CompilerParams(
            dimension_semantics=("parallel", "arbitrary", "arbitrary"),
            vmem_limit_bytes=cfg["vmem_limit"]),
    )(x)

    norm_kernel = functools.partial(_bn_norm_kernel, inv_count=inv_count, eps=eps)
    y = pl.pallas_call(
        norm_kernel,
        out_shape=jax.ShapeDtypeStruct((N, C, L), x.dtype),
        grid=(c_blocks, N, l_blocks),
        in_specs=[
            pl.BlockSpec((1, c_tile, l_tile), lambda ci, n, li: (n, ci, li)),
            pl.BlockSpec((c_tile, 1), lambda ci, n, li: (ci, 0)),
            pl.BlockSpec((c_tile, 1), lambda ci, n, li: (ci, 0)),
            pl.BlockSpec((c_tile, 1), lambda ci, n, li: (ci, 0)),
            pl.BlockSpec((c_tile, 1), lambda ci, n, li: (ci, 0)),
        ],
        out_specs=pl.BlockSpec((1, c_tile, l_tile), lambda ci, n, li: (n, ci, li)),
        compiler_params=pltpu.CompilerParams(
            dimension_semantics=("parallel", "parallel", "parallel"),
            vmem_limit_bytes=cfg["vmem_limit"]),
    )(x, ch_sum, ch_sumsq, gamma2, beta2)
    return y.reshape(N, C, H, W)


# ----------------------- SwitchableBatchNorm2d glue ------------------------- #
class SwitchableBatchNorm2dPallas:
    """Mirror of the PyTorch module: a list of BN params, one selected by
    width_mult at forward time."""

    def __init__(self, num_features_list, width_mult_list, width_mult, key):
        self.num_features_list = list(num_features_list)
        self.width_mult_list = list(width_mult_list)
        self.width_mult = width_mult
        self.num_features = max(self.num_features_list)
        self.eps = 1e-5
        self.params = []
        for nf in self.num_features_list:
            key, k1, k2 = jax.random.split(key, 3)
            gamma = 1.0 + 0.1 * jax.random.normal(k1, (nf,), dtype=jnp.float32)
            beta = 0.1 * jax.random.normal(k2, (nf,), dtype=jnp.float32)
            self.params.append((gamma, beta))

    def __call__(self, x_nchw):
        idx = self.width_mult_list.index(self.width_mult)
        gamma, beta = self.params[idx]
        assert x_nchw.shape[1] == self.num_features_list[idx]
        return _batch_norm_2d_pallas(x_nchw, gamma, beta, eps=self.eps)


# -------------------------------- reference --------------------------------- #
def _batch_norm_2d_ref(x_nchw, gamma, beta, eps=1e-5):
    mean = jnp.mean(x_nchw, axis=(0, 2, 3), keepdims=True)
    var = jnp.mean((x_nchw - mean) ** 2, axis=(0, 2, 3), keepdims=True)
    xhat = (x_nchw - mean) * jax.lax.rsqrt(var + eps)
    return xhat * gamma.reshape(1, -1, 1, 1) + beta.reshape(1, -1, 1, 1)


if __name__ == "__main__":
    key = jax.random.PRNGKey(0)
    k_x, k_p, k_x2, k_p2 = jax.random.split(key, 4)

    # FLAGS-equivalent configuration (synthetic).
    width_mult_list = [0.25, 0.5, 0.75, 1.0]
    num_features_list = [1, 2, 3, 4]      # max = 4 channels at width_mult 1.0
    width_mult = 1.0                      # -> index 3 -> BN with 4 features

    module = SwitchableBatchNorm2dPallas(
        num_features_list, width_mult_list, width_mult, k_p)

    # Input consistent with the selected BN: NCHW = (2, 4, 16, 16)  (fused path)
    x = jax.random.normal(k_x, (2, 4, 16, 16), dtype=jnp.float32)
    y = jax.block_until_ready(module(x))

    idx = width_mult_list.index(width_mult)
    gamma, beta = module.params[idx]
    y_ref = _batch_norm_2d_ref(x, gamma, beta)
    assert y.shape == x.shape and y.dtype == x.dtype
    assert jnp.max(jnp.abs(y - y_ref)) < 1e-4

    # Extra check: exercise the two-pass path (ragged lane tile + ragged channel
    # tile): C=12 -> c_tile=8 (ragged last block), L=144 -> l_tile=128 (masked).
    x2 = jax.random.normal(k_x2, (2, 12, 12, 12), dtype=jnp.float32)
    g2 = 1.0 + 0.1 * jax.random.normal(jax.random.fold_in(k_p2, 0), (12,), dtype=jnp.float32)
    b2 = 0.1 * jax.random.normal(jax.random.fold_in(k_p2, 1), (12,), dtype=jnp.float32)
    y2 = jax.block_until_ready(_batch_norm_2d_pallas(x2, g2, b2, eps=1e-5))
    y2_ref = _batch_norm_2d_ref(x2, g2, b2, eps=1e-5)
    assert jnp.max(jnp.abs(y2 - y2_ref)) < 1e-4

    print("KERNEL_OK")
</pallas_src>

<mosaic_0001>
module attributes {stable_mosaic.version = 11 : i64} {
  func.func @_bn_fused_kernel(%arg0: i32, %arg1: memref<2x4x256xf32, #tpu.memory_space<vmem>>, %arg2: memref<4x1xf32, #tpu.memory_space<vmem>>, %arg3: memref<4x1xf32, #tpu.memory_space<vmem>>, %arg4: memref<2x4x256xf32, #tpu.memory_space<vmem>>) attributes {dimension_semantics = [#tpu.dimension_semantics<parallel>], iteration_bounds = array<i64: 1>, scalar_prefetch = 0 : i64, scratch_operands = 0 : i64, tpu.core_type = #tpu.core_type<tc>, window_params = [{transform_indices = @transform_0, window_bounds = array<i64: 2, 4, 256>}, {transform_indices = @transform_1, window_bounds = array<i64: 4, 1>}, {transform_indices = @transform_2, window_bounds = array<i64: 4, 1>}, {transform_indices = @transform_3, window_bounds = array<i64: 2, 4, 256>}]} {
    %cst = arith.constant 0.000000e+00 : f32
    %0 = vector.broadcast %cst : f32 to vector<4x128xf32>
    %c0_i32 = arith.constant 0 : i32
    %c2_i32 = arith.constant 2 : i32
    %1 = arith.addi %c0_i32, %c2_i32 : i32
    %c1_i32 = arith.constant 1 : i32
    %2:2 = scf.for %arg5 = %c0_i32 to %1 step %c1_i32 iter_args(%arg6 = %0, %arg7 = %0) -> (vector<4x128xf32>, vector<4x128xf32>)  : i32 {
      %28 = arith.index_cast %arg5 : i32 to index
      %c0_14 = arith.constant 0 : index
      %c0_15 = arith.constant 0 : index
      %29 = vector.load %arg1[%28, %c0_14, %c0_15] : memref<2x4x256xf32, #tpu.memory_space<vmem>>, vector<1x4x128xf32>
      %30 = vector.shape_cast %29 : vector<1x4x128xf32> to vector<4x128xf32>
      %31 = arith.addf %arg6, %30 : vector<4x128xf32>
      %32 = arith.mulf %30, %30 : vector<4x128xf32>
      %33 = arith.addf %arg7, %32 : vector<4x128xf32>
      %34 = arith.index_cast %arg5 : i32 to index
      %c0_16 = arith.constant 0 : index
      %c128 = arith.constant 128 : index
      %35 = vector.load %arg1[%34, %c0_16, %c128] : memref<2x4x256xf32, #tpu.memory_space<vmem>>, vector<1x4x128xf32>
      %36 = vector.shape_cast %35 : vector<1x4x128xf32> to vector<4x128xf32>
      %37 = arith.addf %31, %36 : vector<4x128xf32>
      %38 = arith.mulf %36, %36 : vector<4x128xf32>
      %39 = arith.addf %33, %38 : vector<4x128xf32>
      scf.yield %37, %39 : vector<4x128xf32>, vector<4x128xf32>
    }
    %c2_i32_0 = arith.constant 2 : i32
    %cst_1 = arith.constant dense<0.000000e+00> : vector<4xf32>
    %3 = vector.multi_reduction <add>, %2#0, %cst_1 [1] : vector<4x128xf32> to vector<4xf32>
    %4 = vector.shape_cast %3 : vector<4xf32> to vector<4x1xf32>
    %cst_2 = arith.constant 0.001953125 : f32
    %5 = vector.broadcast %cst_2 : f32 to vector<4x1xf32>
    %6 = arith.mulf %4, %5 : vector<4x1xf32>
    %cst_3 = arith.constant dense<0.000000e+00> : vector<4xf32>
    %7 = vector.multi_reduction <add>, %2#1, %cst_3 [1] : vector<4x128xf32> to vector<4xf32>
    %8 = vector.shape_cast %7 : vector<4xf32> to vector<4x1xf32>
    %cst_4 = arith.constant 0.001953125 : f32
    %9 = vector.broadcast %cst_4 : f32 to vector<4x1xf32>
    %10 = arith.mulf %8, %9 : vector<4x1xf32>
    %11 = arith.mulf %6, %6 : vector<4x1xf32>
    %12 = arith.subf %10, %11 : vector<4x1xf32>
    %cst_5 = arith.constant 0.000000e+00 : f32
    %13 = vector.broadcast %cst_5 : f32 to vector<4x1xf32>
    %14 = arith.maximumf %12, %13 : vector<4x1xf32>
    %cst_6 = arith.constant 9.99999974E-6 : f32
    %15 = vector.broadcast %cst_6 : f32 to vector<4x1xf32>
    %16 = arith.addf %14, %15 : vector<4x1xf32>
    %17 = math.rsqrt %16 : vector<4x1xf32>
    %c0 = arith.constant 0 : index
    %c0_7 = arith.constant 0 : index
    %18 = vector.load %arg2[%c0, %c0_7] : memref<4x1xf32, #tpu.memory_space<vmem>>, vector<4x1xf32>
    %19 = arith.mulf %18, %17 : vector<4x1xf32>
    %c0_8 = arith.constant 0 : index
    %c0_9 = arith.constant 0 : index
    %20 = vector.load %arg3[%c0_8, %c0_9] : memref<4x1xf32, #tpu.memory_space<vmem>>, vector<4x1xf32>
    %21 = arith.mulf %6, %19 : vector<4x1xf32>
    %22 = arith.subf %20, %21 : vector<4x1xf32>
    %23 = vector.shape_cast %19 : vector<4x1xf32> to vector<4x1xf32>
    %24 = vector.broadcast %23 : vector<4x1xf32> to vector<4x128xf32>
    %25 = vector.shape_cast %22 : vector<4x1xf32> to vector<4x1xf32>
    %26 = vector.broadcast %25 : vector<4x1xf32> to vector<4x128xf32>
    %c0_i32_10 = arith.constant 0 : i32
    %c2_i32_11 = arith.constant 2 : i32
    %27 = arith.addi %c0_i32_10, %c2_i32_11 : i32
    %c1_i32_12 = arith.constant 1 : i32
    scf.for %arg5 = %c0_i32_10 to %27 step %c1_i32_12  : i32 {
      %c1_i32_14 = arith.constant 1 : i32
      %28 = arith.muli %arg5, %c1_i32_14 : i32
      %c0_i32_15 = arith.constant 0 : i32
      %29 = arith.addi %c0_i32_15, %28 : i32
      %30 = arith.index_cast %29 : i32 to index
      %c0_16 = arith.constant 0 : index
      %c0_17 = arith.constant 0 : index
      %31 = vector.load %arg1[%30, %c0_16, %c0_17] : memref<2x4x256xf32, #tpu.memory_space<vmem>>, vector<1x4x128xf32>
      %32 = vector.shape_cast %31 : vector<1x4x128xf32> to vector<4x128xf32>
      %33 = arith.mulf %32, %24 : vector<4x128xf32>
      %34 = arith.addf %33, %26 : vector<4x128xf32>
      %35 = arith.index_cast %29 : i32 to index
      %c0_18 = arith.constant 0 : index
      %c0_19 = arith.constant 0 : index
      %36 = vector.load %arg4[%35, %c0_18, %c0_19] : memref<2x4x256xf32, #tpu.memory_space<vmem>>, vector<1x4x128xf32>
      %37 = vector.shape_cast %36 : vector<1x4x128xf32> to vector<4x128xf32>
      %38 = vector.shape_cast %34 : vector<4x128xf32> to vector<1x4x128xf32>
      tpu.vector_store %arg4[%35, %c0_18, %c0_19], %38 {strides = array<i32>} : memref<2x4x256xf32, #tpu.memory_space<vmem>>, vector<1x4x128xf32>,
      %39 = arith.index_cast %29 : i32 to index
      %c0_20 = arith.constant 0 : index
      %c128 = arith.constant 128 : index
      %40 = vector.load %arg1[%39, %c0_20, %c128] : memref<2x4x256xf32, #tpu.memory_space<vmem>>, vector<1x4x128xf32>
      %41 = vector.shape_cast %40 : vector<1x4x128xf32> to vector<4x128xf32>
      %42 = arith.mulf %41, %24 : vector<4x128xf32>
      %43 = arith.addf %42, %26 : vector<4x128xf32>
      %44 = arith.index_cast %29 : i32 to index
      %c0_21 = arith.constant 0 : index
      %c128_22 = arith.constant 128 : index
      %45 = vector.load %arg4[%44, %c0_21, %c128_22] : memref<2x4x256xf32, #tpu.memory_space<vmem>>, vector<1x4x128xf32>
      %46 = vector.shape_cast %45 : vector<1x4x128xf32> to vector<4x128xf32>
      %47 = vector.shape_cast %43 : vector<4x128xf32> to vector<1x4x128xf32>
      tpu.vector_store %arg4[%44, %c0_21, %c128_22], %47 {strides = array<i32>} : memref<2x4x256xf32, #tpu.memory_space<vmem>>, vector<1x4x128xf32>,
    }
    %c2_i32_13 = arith.constant 2 : i32
    return
  }
  func.func @transform_0(%arg0: i32) -> (i32, i32, i32) {
    %c0_i32 = arith.constant 0 : i32
    %c0_i32_0 = arith.constant 0 : i32
    %c0_i32_1 = arith.constant 0 : i32
    return %c0_i32, %arg0, %c0_i32_0 : i32, i32, i32
  }
  func.func @transform_1(%arg0: i32) -> (i32, i32) {
    %c0_i32 = arith.constant 0 : i32
    %c0_i32_0 = arith.constant 0 : i32
    return %arg0, %c0_i32 : i32, i32
  }
  func.func @transform_2(%arg0: i32) -> (i32, i32) {
    %c0_i32 = arith.constant 0 : i32
    %c0_i32_0 = arith.constant 0 : i32
    return %arg0, %c0_i32 : i32, i32
  }
  func.func @transform_3(%arg0: i32) -> (i32, i32, i32) {
    %c0_i32 = arith.constant 0 : i32
    %c0_i32_0 = arith.constant 0 : i32
    %c0_i32_1 = arith.constant 0 : i32
    return %c0_i32, %arg0, %c0_i32_0 : i32, i32, i32
  }
}

</mosaic_0001>

<llo_original>
// kernel: _batch_norm_2d_pallas.1
$region0: #{_batch_norm_2d_pallas.1}
  #allocation0 [shape = 'u32[]', space=smem, size = 0x4, offset = 0x4, fixed_abs, tag = 'smem constant byte address 0x4 - core index']
  #allocation1 [shape = 'u32[144,128]{1,0:T(1,128)}', space=vmem, size = 0x12000, scoped, tag = 'internal scratch']
  %s0 = inlined_call_operand.vmem [shape: f32[2,4,256], index: 0, kind: input, shape index: {}]
  %s1 = inlined_call_operand.vmem [shape: f32[4,1], index: 1, kind: input, shape index: {}]
  %s2 = inlined_call_operand.vmem [shape: f32[4,1], index: 2, kind: input, shape index: {}]
  %s3 = inlined_call_operand.vmem [shape: f32[2,4,256], index: 3, kind: output, shape index: {}]
  %s4 = sld [smem:[#allocation0]]
  $region36: #{_batch_norm_2d_pallas.1} parent=0
    _
  %s6 = ssub.s32 1, %s4
  %s7 = scalar_select 0, %s6, %s4
  // Predicated region
  $region2: #{_batch_norm_2d_pallas.1} parent=0 // pred_check
    _
  $region3: #{_batch_norm_2d_pallas.1} parent=0 // pred_check_branch
    %9 = sbr.rel (0) target = $region5
  $region4: #{_batch_norm_2d_pallas.1} parent=0 // pred_region
    _
  $region5: #{_batch_norm_2d_pallas.1} parent=0 // pred_fallthru
    _
  // Predicated region
  $region6: #{_batch_norm_2d_pallas.1} parent=0 // pred_check
    _
  $region7: #{_batch_norm_2d_pallas.1} parent=0 // pred_check_branch
    %11 = sbr.rel (0) target = $region9
  $region8: #{_batch_norm_2d_pallas.1} parent=0 // pred_region
    _
  $region9: #{_batch_norm_2d_pallas.1} parent=0 // pred_fallthru
    _
  // Predicated region
  $region10: #{_batch_norm_2d_pallas.1} parent=0 // pred_check
    _
  $region11: #{_batch_norm_2d_pallas.1} parent=0 // pred_check_branch
    %13 = sbr.rel (0) target = $region13
  $region12: #{_batch_norm_2d_pallas.1} parent=0 // pred_region
    _
  $region13: #{_batch_norm_2d_pallas.1} parent=0 // pred_fallthru
    _
  loop: start=0, step=1, limit=2
  $region14: #{_batch_norm_2d_pallas.1} parent=0 // loop_pre_header
    _
  $region15: #{_batch_norm_2d_pallas.1} parent=0 // loop_header
    %s15 = sphi 0, %s19
    %p16 = scmp.ge.s32.totalorder %s15, 2
    %v20 = vphi 0.0, %v30
    %v21 = vphi 0.0, %v32
  $region16: #{_batch_norm_2d_pallas.1} parent=0 // loop_header_branch
    %18 = sbr.rel (%p16) target = $region20
  $region17: #{_batch_norm_2d_pallas.1} parent=0 // loop_body
    %s22 = smul.u32 %s15, 2
    %s23 = smul.addr %s22, 4
    %s24 = scalar_lea.vmem %s0, %s23
    %v25 = vld [vmem:[%s24] sm:$0xf]
    %v26 = vadd.f32 %v20, %v25
    %v27 = vmul.f32 %v25, %v25
    %v28 = vadd.f32 %v21, %v27
    %v29 = vld [vmem:[%s24 + $0x4] sm:$0xf]
    %v30 = vadd.f32 %v26, %v29
    %v31 = vmul.f32 %v29, %v29
    %v32 = vadd.f32 %v28, %v31
  $region18: #{_batch_norm_2d_pallas.1} parent=0 // loop_footer
    %s19 = sadd.s32 1, %s15
  $region19: #{_batch_norm_2d_pallas.1} parent=0 // loop_footer_branch
    %14 = sbr.rel target = $region15
  $region20: #{_batch_norm_2d_pallas.1} parent=0 // loop_exit
    _
  %vm33 = vcmask 1043456
  %v34 = vsel %vm33, %v20, 0.0
  %35 = vadd.xlane.f32.xlu0 %v34
  %v36 = vpop.xlane.xlu0 %35
  %v37 = vmul.f32 %v36, 0.001953125
  %v38 = vsel %vm33, %v21, 0.0
  %39 = vadd.xlane.f32.xlu0 %v38
  %v40 = vpop.xlane.xlu0 %39
  %v41 = vmul.f32 %v40, 0.001953125
  %v42 = vmul.f32 %v37, %v37
  %v43 = vsub.f32 %v41, %v42
  %v44 = vmax.f32 %v43, 0.0
  %v45 = vadd.f32 %v44, 1e-05
  %v46 = vrsqrt.pop %v45
  %v47 = vld [vmem:[%s1] sm:$0xf]
  %v48 = vmul.f32 %v47, %v46
  %v49 = vld [vmem:[%s2] sm:$0xf]
  %v50 = vmul.f32 %v37, %v48
  %v51 = vsub.f32 %v49, %v50
  %53 = vset.pattern.permute.xlu0 0
  %54 = vperm.xlu0 %53, %v48
  %v55 = vpop.permute.xlu0 %54
  %58 = vset.pattern.permute.xlu0 0
  %59 = vperm.xlu0 %58, %v51
  %v60 = vpop.permute.xlu0 %59
  loop: start=0, step=1, limit=2
  $region21: #{_batch_norm_2d_pallas.1} parent=0 // loop_pre_header
    _
  $region22: #{_batch_norm_2d_pallas.1} parent=0 // loop_header
    %s63 = sphi 0, %s67
    %p64 = scmp.ge.s32.totalorder %s63, 2
  $region23: #{_batch_norm_2d_pallas.1} parent=0 // loop_header_branch
    %66 = sbr.rel (%p64) target = $region27
  $region24: #{_batch_norm_2d_pallas.1} parent=0 // loop_body
    %s68 = smul.u32 %s63, 2
    %s69 = smul.addr %s68, 4
    %s70 = scalar_lea.vmem %s0, %s69
    %v71 = vld [vmem:[%s70] sm:$0xf]
    %v72 = vmul.f32 %v71, %v55
    %v73 = vadd.f32 %v72, %v60
    %s74 = smul.addr %s68, 4
    %s75 = scalar_lea.vmem %s3, %s74
    %76 = vst [vmem:[%s75] sm:$0xf] %v73
    %v77 = vld [vmem:[%s70 + $0x4] sm:$0xf]
    %v78 = vmul.f32 %v77, %v55
    %v79 = vadd.f32 %v78, %v60
    %80 = vst [vmem:[%s75 + $0x4] sm:$0xf] %v79
  $region25: #{_batch_norm_2d_pallas.1} parent=0 // loop_footer
    %s67 = sadd.s32 1, %s63
  $region26: #{_batch_norm_2d_pallas.1} parent=0 // loop_footer_branch
    %62 = sbr.rel target = $region22
  $region27: #{_batch_norm_2d_pallas.1} parent=0 // loop_exit
    _
  // Predicated region
  $region28: #{_batch_norm_2d_pallas.1} parent=0 // pred_check
    _
  $region29: #{_batch_norm_2d_pallas.1} parent=0 // pred_check_branch
    %82 = sbr.rel (0) target = $region31
  $region30: #{_batch_norm_2d_pallas.1} parent=0 // pred_region
    _
  $region31: #{_batch_norm_2d_pallas.1} parent=0 // pred_fallthru
    _
  // Predicated region
  $region32: #{_batch_norm_2d_pallas.1} parent=0 // pred_check
    _
  $region33: #{_batch_norm_2d_pallas.1} parent=0 // pred_check_branch
    %84 = sbr.rel (0) target = $region35
  $region34: #{_batch_norm_2d_pallas.1} parent=0 // pred_region
    _
  $region35: #{_batch_norm_2d_pallas.1} parent=0 // pred_fallthru
    _

</llo_original>
